<compile_context>
chip_gen: v7x
topology: tpu7x:2x2x1
jax: 0.10.0
libtpu: 0.0.40
codegen_flags: <defaults>
</compile_context>

<pallas_src>
import jax
import jax.numpy as jnp
from jax.experimental import pallas as pl
from jax.experimental.pallas import tpu as pltpu


# ----------------------------- helpers ------------------------------------- #

def _round_up(x: int, m: int) -> int:
    return (x + m - 1) // m * m


def _sublane(dtype) -> int:
    # f32 tiles are (8, 128); sub-32-bit dtypes pack 2x along sublanes -> 16.
    return 8 if jnp.dtype(dtype).itemsize >= 4 else 16


def _choose_tb(B: int, block_b: int, dtype) -> int:
    """Batch tile: big (amortize grid-step overhead), sublane-aligned, and
    split so the 'parallel' batch grid has >= 2 steps when B is large enough
    (v7x has two TensorCores)."""
    sl = _sublane(dtype)
    tb = _round_up(max(1, min(B, block_b)), sl)
    if pl.cdiv(B, tb) < 2 and B > 2 * sl:
        tb = _round_up(pl.cdiv(B, 2), sl)
    return max(tb, sl)


def _fit_tb_to_vmem(tb: int, F: int, w_cols: int, out_cols: int,
                    itemsize: int, sl: int, budget_bytes: int = 14 << 20) -> int:
    """Cap TB so double-buffered (x tile + output tiles) plus the grid-invariant
    weight/bias stay under the smallest default scoped-VMEM limit (16 MiB on
    v5e; v6e/v7x default to 32 MiB, v7x physical VMEM is 64 MiB)."""
    fixed = 2 * (F * w_cols + w_cols) * itemsize           # weight + bias buffers
    per_row = 2 * (F + out_cols) * itemsize                # x + outputs, dbl-buffered
    max_rows = max(sl, (budget_bytes - fixed) // max(per_row, 1))
    max_rows = max(sl, (max_rows // sl) * sl)
    return min(tb, max_rows)


# ----------------------------- kernels ------------------------------------- #

def _linear_bias_kernel(x_ref, w_ref, b_ref, o_ref):
    # x: (TB, F), w: (F, A), b: (1, A) -> o: (TB, A)
    acc = jnp.dot(x_ref[...], w_ref[...], preferred_element_type=jnp.float32)
    o_ref[...] = (acc + b_ref[...]).astype(o_ref.dtype)


def _loc_scale_kernel(x_ref, wl_ref, bl_ref, ws_ref, bs_ref, loc_ref, scale_ref):
    # x: (TB, F); wl/ws: (F, A); bl/bs: (1, A) -> loc/scale: (TB, A)
    x = x_ref[...]
    loc = jnp.dot(x, wl_ref[...], preferred_element_type=jnp.float32) + bl_ref[...]
    s = jnp.dot(x, ws_ref[...], preferred_element_type=jnp.float32) + bs_ref[...]
    loc_ref[...] = loc.astype(loc_ref.dtype)
    scale_ref[...] = jnp.exp(s).astype(scale_ref.dtype)   # exp -> EUP slot


# ----------------------- one-time parameter packing ------------------------ #

def prepare_fixed_std_params(weight, bias, actor_std):
    """predict_std=False. weight: [F, A] (transposed vs. nn.Linear.weight),
    bias: [A], actor_std: [A]. Call once at init, not per forward."""
    return {
        "weight": weight,
        "bias": bias.reshape(1, -1),
        "actor_std": actor_std,
    }


def prepare_predict_std_params(weight, bias):
    """predict_std=True. weight: [F, 2A] (cols [:A]=loc, [A:]=pre-exp scale),
    bias: [2A]. Split once so the kernel never slices non-aligned columns."""
    A = weight.shape[1] // 2
    return {
        "w_loc": weight[:, :A],
        "b_loc": bias[:A].reshape(1, A),
        "w_std": weight[:, A:],
        "b_std": bias[A:].reshape(1, A),
    }


# ----------------------------- forward wrappers ----------------------------- #

def actor_forward_fixed_std(features, params, *, block_b=1024,
                            broadcast_scale=True):
    """predict_std=False path. Returns (loc [B, A], scale)."""
    w, b2, actor_std = params["weight"], params["bias"], params["actor_std"]
    B, F = features.shape
    A = w.shape[1]
    itemsize = jnp.dtype(features.dtype).itemsize
    sl = _sublane(features.dtype)

    TB = _choose_tb(B, block_b, features.dtype)
    TB = _fit_tb_to_vmem(TB, F, w_cols=A, out_cols=A, itemsize=itemsize, sl=sl)

    loc = pl.pallas_call(
        _linear_bias_kernel,
        out_shape=jax.ShapeDtypeStruct((B, A), features.dtype),
        grid=(pl.cdiv(B, TB),),
        in_specs=[
            pl.BlockSpec((TB, F), lambda i: (i, 0)),     # pipelined over batch
            pl.BlockSpec((F, A), lambda i: (0, 0)),      # grid-invariant
            pl.BlockSpec((1, A), lambda i: (0, 0)),      # grid-invariant
        ],
        out_specs=pl.BlockSpec((TB, A), lambda i: (i, 0)),
        compiler_params=pltpu.CompilerParams(
            dimension_semantics=("parallel",)),
        cost_estimate=pl.CostEstimate(
            flops=2 * B * F * A,
            transcendentals=0,
            bytes_accessed=(B * F + F * A + A + B * A) * itemsize),
    )(features, w, b2)

    # scale is feature-independent: tiny [A] compute in plain JAX, no kernel
    # writeback.  Broadcast only if the caller wants expand_as semantics.
    scale_row = jnp.exp(actor_std).astype(loc.dtype)
    scale = jnp.broadcast_to(scale_row, loc.shape) if broadcast_scale else scale_row
    return loc, scale


def actor_forward_predict_std(features, params, *, block_b=1024):
    """predict_std=True path. Returns (loc [B, A], scale [B, A])."""
    w_loc, b_loc = params["w_loc"], params["b_loc"]
    w_std, b_std = params["w_std"], params["b_std"]
    B, F = features.shape
    A = w_loc.shape[1]
    itemsize = jnp.dtype(features.dtype).itemsize
    sl = _sublane(features.dtype)

    TB = _choose_tb(B, block_b, features.dtype)
    TB = _fit_tb_to_vmem(TB, F, w_cols=2 * A, out_cols=2 * A,
                         itemsize=itemsize, sl=sl)

    loc, scale = pl.pallas_call(
        _loc_scale_kernel,
        out_shape=(
            jax.ShapeDtypeStruct((B, A), features.dtype),
            jax.ShapeDtypeStruct((B, A), features.dtype),
        ),
        grid=(pl.cdiv(B, TB),),
        in_specs=[
            pl.BlockSpec((TB, F), lambda i: (i, 0)),
            pl.BlockSpec((F, A), lambda i: (0, 0)),
            pl.BlockSpec((1, A), lambda i: (0, 0)),
            pl.BlockSpec((F, A), lambda i: (0, 0)),
            pl.BlockSpec((1, A), lambda i: (0, 0)),
        ],
        out_specs=(
            pl.BlockSpec((TB, A), lambda i: (i, 0)),
            pl.BlockSpec((TB, A), lambda i: (i, 0)),
        ),
        compiler_params=pltpu.CompilerParams(
            dimension_semantics=("parallel",)),
        cost_estimate=pl.CostEstimate(
            flops=2 * B * F * (2 * A),
            transcendentals=B * A,
            bytes_accessed=(B * F + 2 * F * A + 2 * A + 2 * B * A) * itemsize),
    )(features, w_loc, b_loc, w_std, b_std)
    return loc, scale


# ----------------------------- main ----------------------------------------- #

if __name__ == "__main__":
    key = jax.random.PRNGKey(0)
    B, F, A = 8, 32, 4  # batch, feature dim (LazyLinear infers F), action_dim

    k_x, k_w, k_b, k_w2, k_b2, k_x2 = jax.random.split(key, 6)

    features = jax.random.normal(k_x, (B, F), dtype=jnp.float32)

    # Deterministic parameter init (synthetic; mimics nn.Linear uniform scale).
    bound = 1.0 / (F ** 0.5)
    # predict_std=False parameters
    weight = jax.random.uniform(k_w, (F, A), minval=-bound, maxval=bound,
                                dtype=jnp.float32)
    bias = jax.random.uniform(k_b, (A,), minval=-bound, maxval=bound,
                              dtype=jnp.float32)
    actor_std = jnp.zeros((A,), dtype=jnp.float32)  # nn.Parameter(torch.zeros(A))

    # predict_std=True parameters
    weight2 = jax.random.uniform(k_w2, (F, 2 * A), minval=-bound, maxval=bound,
                                 dtype=jnp.float32)
    bias2 = jax.random.uniform(k_b2, (2 * A,), minval=-bound, maxval=bound,
                               dtype=jnp.float32)

    # One-time parameter packing (outside the forward path).
    p_fixed = prepare_fixed_std_params(weight, bias, actor_std)
    p_pred = prepare_predict_std_params(weight2, bias2)

    # --- predict_std=False (default) ---
    loc, scale = actor_forward_fixed_std(features, p_fixed)
    loc = jax.block_until_ready(loc)
    scale = jax.block_until_ready(scale)

    loc_ref = features @ weight + bias
    scale_ref = jnp.broadcast_to(jnp.exp(actor_std), loc_ref.shape)
    assert loc.shape == (B, A) and scale.shape == (B, A)
    assert jnp.allclose(loc, loc_ref, atol=1e-5), "loc mismatch"
    assert jnp.allclose(scale, scale_ref, atol=1e-5), "scale mismatch"

    # --- predict_std=True ---
    loc2, scale2 = actor_forward_predict_std(features, p_pred)
    loc2 = jax.block_until_ready(loc2)
    scale2 = jax.block_until_ready(scale2)

    out_ref = features @ weight2 + bias2
    loc2_ref, s2_ref = out_ref[:, :A], out_ref[:, A:]
    assert jnp.allclose(loc2, loc2_ref, atol=1e-5), "loc (predict_std) mismatch"
    assert jnp.allclose(scale2, jnp.exp(s2_ref), atol=1e-5), "scale (predict_std) mismatch"

    # --- exercise the multi-step grid + ragged last batch tile (B % TB != 0) ---
    B2 = 20
    features_big = jax.random.normal(k_x2, (B2, F), dtype=jnp.float32)

    loc3, scale3 = actor_forward_fixed_std(features_big, p_fixed, block_b=8)
    loc3 = jax.block_until_ready(loc3)
    loc3_ref = features_big @ weight + bias
    assert loc3.shape == (B2, A)
    assert jnp.allclose(loc3, loc3_ref, atol=1e-5), "loc (tiled batch) mismatch"
    assert jnp.allclose(scale3, jnp.broadcast_to(jnp.exp(actor_std), loc3_ref.shape),
                        atol=1e-5), "scale (tiled batch) mismatch"

    loc4, scale4 = actor_forward_predict_std(features_big, p_pred, block_b=8)
    loc4 = jax.block_until_ready(loc4)
    out4_ref = features_big @ weight2 + bias2
    assert jnp.allclose(loc4, out4_ref[:, :A], atol=1e-5), "loc (predict_std, tiled) mismatch"
    assert jnp.allclose(scale4, jnp.exp(out4_ref[:, A:]), atol=1e-5), \
        "scale (predict_std, tiled) mismatch"

    print("KERNEL_OK")
</pallas_src>

<mosaic_0001>
module attributes {stable_mosaic.version = 11 : i64} {
  func.func @_linear_bias_kernel(%arg0: i32, %arg1: memref<8x32xf32, #tpu.memory_space<vmem>>, %arg2: memref<32x4xf32, #tpu.memory_space<vmem>>, %arg3: memref<1x4xf32, #tpu.memory_space<vmem>>, %arg4: memref<8x4xf32, #tpu.memory_space<vmem>>) attributes {dimension_semantics = [#tpu.dimension_semantics<parallel>], iteration_bounds = array<i64: 1>, scalar_prefetch = 0 : i64, scratch_operands = 0 : i64, tpu.core_type = #tpu.core_type<tc>, window_params = [{transform_indices = @transform_0, window_bounds = array<i64: 8, 32>}, {pipeline_mode = #tpu.pipeline_mode<synchronous>, transform_indices = @transform_1, window_bounds = array<i64: 32, 4>}, {pipeline_mode = #tpu.pipeline_mode<synchronous>, transform_indices = @transform_2, window_bounds = array<i64: 1, 4>}, {transform_indices = @transform_3, window_bounds = array<i64: 8, 4>}]} {
    %c0 = arith.constant 0 : index
    %c0_0 = arith.constant 0 : index
    %0 = vector.load %arg1[%c0, %c0_0] : memref<8x32xf32, #tpu.memory_space<vmem>>, vector<8x32xf32>
    %c0_1 = arith.constant 0 : index
    %c0_2 = arith.constant 0 : index
    %1 = vector.load %arg2[%c0_1, %c0_2] : memref<32x4xf32, #tpu.memory_space<vmem>>, vector<32x4xf32>
    %cst = arith.constant dense<0.000000e+00> : vector<8x4xf32>
    %2 = tpu.matmul %0, %1, %cst {dimension_numbers = #tpu.dot_dimension_numbers<[1], [0], [0], [1], [0, 0, 1, 1], [], []>} : vector<8x32xf32>, vector<32x4xf32>, vector<8x4xf32> -> vector<8x4xf32>
    %c0_3 = arith.constant 0 : index
    %c0_4 = arith.constant 0 : index
    %3 = vector.load %arg3[%c0_3, %c0_4] : memref<1x4xf32, #tpu.memory_space<vmem>>, vector<1x4xf32>
    %4 = vector.broadcast %3 : vector<1x4xf32> to vector<8x4xf32>
    %5 = arith.addf %2, %4 : vector<8x4xf32>
    %c0_5 = arith.constant 0 : index
    %c0_6 = arith.constant 0 : index
    %6 = vector.load %arg4[%c0_5, %c0_6] : memref<8x4xf32, #tpu.memory_space<vmem>>, vector<8x4xf32>
    tpu.vector_store %arg4[%c0_5, %c0_6], %5 {strides = array<i32>} : memref<8x4xf32, #tpu.memory_space<vmem>>, vector<8x4xf32>,
    return
  }
  func.func @transform_0(%arg0: i32) -> (i32, i32) {
    %c0_i32 = arith.constant 0 : i32
    %c0_i32_0 = arith.constant 0 : i32
    return %arg0, %c0_i32 : i32, i32
  }
  func.func @transform_1(%arg0: i32) -> (i32, i32) {
    %c0_i32 = arith.constant 0 : i32
    %c0_i32_0 = arith.constant 0 : i32
    %c0_i32_1 = arith.constant 0 : i32
    return %c0_i32, %c0_i32_0 : i32, i32
  }
  func.func @transform_2(%arg0: i32) -> (i32, i32) {
    %c0_i32 = arith.constant 0 : i32
    %c0_i32_0 = arith.constant 0 : i32
    %c0_i32_1 = arith.constant 0 : i32
    return %c0_i32, %c0_i32_0 : i32, i32
  }
  func.func @transform_3(%arg0: i32) -> (i32, i32) {
    %c0_i32 = arith.constant 0 : i32
    %c0_i32_0 = arith.constant 0 : i32
    return %arg0, %c0_i32 : i32, i32
  }
}

</mosaic_0001>

<llo_original>
// kernel: tpu_custom_call.1
$region0: #{tpu_custom_call.1}
  #allocation0 [shape = 'u32[]', space=smem, size = 0x4, offset = 0x4, fixed_abs, tag = 'smem constant byte address 0x4 - core index']
  #allocation1 [shape = 'u32[144,128]{1,0:T(1,128)}', space=vmem, size = 0x12000, scoped, tag = 'internal scratch']
  %s0 = inlined_call_operand.vmem [shape: f32[8,32], index: 0, kind: input, shape index: {}]
  %s1 = inlined_call_operand.vmem [shape: f32[32,4], index: 1, kind: input, shape index: {}]
  %s2 = inlined_call_operand.vmem [shape: f32[1,4], index: 2, kind: input, shape index: {}]
  %s3 = inlined_call_operand.vmem [shape: f32[8,4], index: 3, kind: output, shape index: {}]
  %s4 = sld [smem:[#allocation0]]
  $region22: #{tpu_custom_call.1} parent=0
    _
  %s6 = ssub.s32 1, %s4
  %s7 = scalar_select 0, %s6, %s4
  // Predicated region
  $region2: #{tpu_custom_call.1} parent=0 // pred_check
    _
  $region3: #{tpu_custom_call.1} parent=0 // pred_check_branch
    %9 = sbr.rel (0) target = $region5
  $region4: #{tpu_custom_call.1} parent=0 // pred_region
    _
  $region5: #{tpu_custom_call.1} parent=0 // pred_fallthru
    _
  // Predicated region
  $region6: #{tpu_custom_call.1} parent=0 // pred_check
    _
  $region7: #{tpu_custom_call.1} parent=0 // pred_check_branch
    %11 = sbr.rel (0) target = $region9
  $region8: #{tpu_custom_call.1} parent=0 // pred_region
    _
  $region9: #{tpu_custom_call.1} parent=0 // pred_fallthru
    _
  // Predicated region
  $region10: #{tpu_custom_call.1} parent=0 // pred_check
    _
  $region11: #{tpu_custom_call.1} parent=0 // pred_check_branch
    %13 = sbr.rel (0) target = $region13
  $region12: #{tpu_custom_call.1} parent=0 // pred_region
    _
  $region13: #{tpu_custom_call.1} parent=0 // pred_fallthru
    _
  %v14 = vld [vmem:[%s0] sm:$0xff]
  %v15 = vld [vmem:[%s1] sm:$0xff]
  %v16 = vld [vmem:[%s1 + $0x8] sm:$0xff]
  %v17 = vld [vmem:[%s1 + $0x10] sm:$0xff]
  %v18 = vld [vmem:[%s1 + $0x18] sm:$0xff]
  %v19 = vld [vmem:[%s2] sm:$0x1]
  %v21 = vlaneseq
  %v22 = vshrl.u32 %v21, 7
  %v23 = vsub.s32 0, %v22
  %v24 = vrot.slane %v19, %v23
  %vm26 = vcmask 261120
  %v28 = vsel %vm26, %v14, 0
  %30 = vmatprep.subr.mxu0 0.0
  %31 = vmatpush1.msra.mxu0 %v15
  %32 = vmatprep.subr.mxu0 0.0
  %33 = vmatpush1.msra.mxu0 %v16
  %34 = vmatprep.subr.mxu0 0.0
  %35 = vmatpush1.msra.mxu0 %v17
  %36 = vmatprep.subr.mxu0 0.0
  %37 = vmatpush1.msra.mxu0 %v18
  %38 = vmatprep.subr.mxu0 0.0
  %39 = vmatpush1.msra.mxu0 0.0
  %40 = vmatprep.subr.mxu0 0.0
  %41 = vmatpush1.msra.mxu0 0.0
  %42 = vmatprep.subr.mxu0 0.0
  %43 = vmatpush1.msra.mxu0 0.0
  %44 = vmatprep.subr.mxu0 0.0
  %45 = vmatpush1.msra.mxu0 0.0
  %46 = vmatprep.subr.mxu0 0.0
  %47 = vmatpush1.msra.mxu0 0.0
  %48 = vmatprep.subr.mxu0 0.0
  %49 = vmatpush1.msra.mxu0 0.0
  %50 = vmatprep.subr.mxu0 0.0
  %51 = vmatpush1.msra.mxu0 0.0
  %52 = vmatprep.subr.mxu0 0.0
  %53 = vmatpush1.msra.mxu0 0.0
  %54 = vmatprep.subr.mxu0 0.0
  %55 = vmatpush1.msra.mxu0 0.0
  %56 = vmatprep.subr.mxu0 0.0
  %57 = vmatpush1.msra.mxu0 0.0
  %58 = vmatprep.subr.mxu0 0.0
  %59 = vmatpush1.msra.mxu0 0.0
  %60 = vmatprep.subr.mxu0 0.0
  %61 = vmatpush1.msra.mxu0 0.0
  %62 = vmatprep.subr.mxu0 0.0
  %63 = vmatpush1.msra.mxu0 0.0
  %64 = vmatprep.subr.mxu0 0.0
  %65 = vmatpush1.msra.mxu0 0.0
  %66 = vmatprep.subr.mxu0 0.0
  %67 = vmatpush1.msra.mxu0 0.0
  %68 = vmatprep.subr.mxu0 0.0
  %69 = vmatpush1.msra.mxu0 0.0
  %70 = vmatprep.subr.mxu0 0.0
  %71 = vmatpush1.msra.mxu0 0.0
  %72 = vmatprep.subr.mxu0 0.0
  %73 = vmatpush1.msra.mxu0 0.0
  %74 = vmatprep.subr.mxu0 0.0
  %75 = vmatpush1.msra.mxu0 0.0
  %76 = vmatprep.subr.mxu0 0.0
  %77 = vmatpush1.msra.mxu0 0.0
  %78 = vmatprep.subr.mxu0 0.0
  %79 = vmatpush1.msra.mxu0 0.0
  %80 = vmatprep.subr.mxu0 0.0
  %81 = vmatpush1.msra.mxu0 0.0
  %82 = vmatprep.subr.mxu0 0.0
  %83 = vmatpush1.msra.mxu0 0.0
  %84 = vmatprep.subr.mxu0 0.0
  %85 = vmatpush1.msra.mxu0 0.0
  %86 = vmatprep.subr.mxu0 0.0
  %87 = vmatpush1.msra.mxu0 0.0
  %88 = vmatprep.subr.mxu0 0.0
  %89 = vmatpush1.msra.mxu0 0.0
  %90 = vmatprep.subr.mxu0 0.0
  %91 = vmatpush1.msra.mxu0 0.0
  %92 = vmatprep.subr.mxu0 0.0
  %93 = vmatpush1.msra.mxu0 0.0
  %94 = vmatprep.mubr.f32.mxu0 0.0
  %95 = vmatmul.mubr.f32.gmra.mrb[0].mxu0 %v28
  %v96 = vpop.f32.mrb[0].mxu0
  %v97 = vadd.f32 %v24, %v96
  %v98 = vpop.f32.mrb[0].mxu0
  %99 = vdwg.mxu0
  %vm100 = vcmask 31744
  %101 = vst.msk [vmem:[%s3] sm:$0xff] %vm100, %v97
  // Predicated region
  $region14: #{tpu_custom_call.1} parent=0 // pred_check
    _
  $region15: #{tpu_custom_call.1} parent=0 // pred_check_branch
    %103 = sbr.rel (0) target = $region17
  $region16: #{tpu_custom_call.1} parent=0 // pred_region
    _
  $region17: #{tpu_custom_call.1} parent=0 // pred_fallthru
    _
  // Predicated region
  $region18: #{tpu_custom_call.1} parent=0 // pred_check
    _
  $region19: #{tpu_custom_call.1} parent=0 // pred_check_branch
    %105 = sbr.rel (0) target = $region21
  $region20: #{tpu_custom_call.1} parent=0 // pred_region
    _
  $region21: #{tpu_custom_call.1} parent=0 // pred_fallthru
    _

</llo_original>
